<compile_context>
chip_gen: v5e
topology: v5e:2x2
jax: 0.10.0
libtpu: 0.0.40
codegen_flags: <defaults>
</compile_context>

<pallas_src>
import functools

import jax
import jax.numpy as jnp
from jax.experimental import pallas as pl
from jax.experimental.pallas import tpu as pltpu


def _round_up(x, m):
    return ((x + m - 1) // m) * m


def _spec(shape, index_map, *, invariant):
    """BlockSpec; single-buffer it when its index_map is constant over the grid."""
    if invariant:
        try:
            return pl.BlockSpec(shape, index_map, pipeline_mode=pl.Buffered(1))
        except TypeError:  # older jax without pipeline_mode kwarg
            pass
    return pl.BlockSpec(shape, index_map)


def mlp_kernel(x_ref, w1_ref, b1_ref, w2_ref, b2_ref, out_ref, acc_ref):
    """Grid = (batch tiles, hidden tiles). Hidden axis is the reduction axis."""
    h_idx = pl.program_id(1)

    @pl.when(h_idx == 0)
    def _init():
        acc_ref[...] = jnp.zeros_like(acc_ref)

    # fc1 block: (tb, Din) @ (Din, th) -> (tb, th), f32 accumulation on MXU,
    # fused bias + ReLU in f32 (value stays in vregs, no scratch round-trip).
    h = jnp.dot(x_ref[...], w1_ref[...], preferred_element_type=jnp.float32)
    h = jnp.maximum(h + b1_ref[...], 0.0)

    # fc2 partial: (tb, th) @ (th, Dout_p) accumulated into the f32 scratch.
    acc_ref[...] += jnp.dot(
        h.astype(w2_ref.dtype), w2_ref[...], preferred_element_type=jnp.float32)

    @pl.when(h_idx == pl.num_programs(1) - 1)
    def _finalize():
        o = acc_ref[...] + b2_ref[...]
        # sigmoid(o) = 0.5 * tanh(0.5 * o) + 0.5 : one EUP transcendental,
        # exact, and well-behaved for very negative / positive logits.
        out_ref[...] = (0.5 * jnp.tanh(0.5 * o) + 0.5).astype(out_ref.dtype)


def prepare_mlp_params(w1, b1, w2, b2, *,
                       compute_dtype=jnp.bfloat16, block_h=512):
    """One-time parameter prep (do at load time, NOT per forward call).

    Takes PyTorch nn.Linear layout: w1 (H, Din), b1 (H,), w2 (Dout, H), b2 (Dout,).
    Transposes to (in, out), zero-pads H / Dout, casts matmul operands.
    """
    H, Din = w1.shape
    Dout, H2 = w2.shape
    assert H2 == H and b1.shape == (H,) and b2.shape == (Dout,)

    # Hidden tiling: if H fits in one block use the full (untiled) extent,
    # otherwise tile with a multiple of 128 (lane/sublane constraints).
    if H > block_h:
        th = _round_up(block_h, 128)
        H_p = _round_up(H, th)
    else:
        th, H_p = H, H
    Dout_p = _round_up(Dout, 128)  # lane-dense output -> unmasked vst

    w1t = w1.T.astype(compute_dtype)                       # (Din, H)
    w2t = w2.T.astype(compute_dtype)                       # (H, Dout)
    b1r = b1.reshape(1, H).astype(jnp.float32)
    b2r = b2.reshape(1, Dout).astype(jnp.float32)
    if H_p != H:
        w1t = jnp.zeros((Din, H_p), compute_dtype).at[:, :H].set(w1t)
        b1r = jnp.zeros((1, H_p), jnp.float32).at[:, :H].set(b1r)
    if H_p != H or Dout_p != Dout:
        w2t = jnp.zeros((H_p, Dout_p), compute_dtype).at[:H, :Dout].set(w2t)
    if Dout_p != Dout:
        b2r = jnp.zeros((1, Dout_p), jnp.float32).at[:, :Dout].set(b2r)

    meta = dict(Din=Din, H=H, H_p=H_p, th=th, Dout=Dout, Dout_p=Dout_p,
                compute_dtype=jnp.dtype(compute_dtype))
    return (w1t, b1r, w2t, b2r), meta


def _estimate_vmem_limit(tb, Din, th, Dout_p, nb, nh, cbytes, obytes):
    nbuf = lambda invariant: 1 if invariant else 2
    footprint = (tb * Din * cbytes * nbuf(nb == 1)        # x tile
                 + Din * th * cbytes * nbuf(nh == 1)      # w1t tile
                 + th * 4 * nbuf(nh == 1)                 # b1
                 + th * Dout_p * cbytes * nbuf(nh == 1)   # w2t tile
                 + Dout_p * 4                             # b2 (single-buffered)
                 + tb * Dout_p * obytes * 2               # output tile
                 + tb * Dout_p * 4)                       # f32 accumulator scratch
    limit = max(int(footprint * 1.25) + (2 << 20), 8 << 20)
    limit = min(limit, 48 << 20)                          # stay under v7x 64 MiB/TC
    return max(limit, int(footprint) + (1 << 20))


def mlp_forward(x, params, meta, *, block_b=256, out_dtype=jnp.float32):
    """Fused MLP forward. x: (B, Din); params/meta from prepare_mlp_params."""
    w1t, b1r, w2t, b2r = params
    B, Din = x.shape
    assert Din == meta["Din"]
    cdt = meta["compute_dtype"]
    H_p, th = meta["H_p"], meta["th"]
    Dout, Dout_p = meta["Dout"], meta["Dout_p"]

    # Batch tile: multiple of the native sublane packing for the compute dtype.
    sublane = 8 * (4 // cdt.itemsize)
    tb = min(_round_up(block_b, sublane), _round_up(B, sublane))
    B_p = _round_up(B, tb)
    x_p = x.astype(cdt)
    if B_p != B:
        x_p = jnp.zeros((B_p, Din), cdt).at[:B, :].set(x_p)

    nb, nh = B_p // tb, H_p // th
    vmem_limit = _estimate_vmem_limit(tb, Din, th, Dout_p, nb, nh,
                                      cdt.itemsize, jnp.dtype(out_dtype).itemsize)

    out = pl.pallas_call(
        mlp_kernel,
        out_shape=jax.ShapeDtypeStruct((B_p, Dout_p), out_dtype),
        grid=(nb, nh),
        in_specs=[
            _spec((tb, Din), lambda i, h: (i, 0), invariant=(nb == 1)),     # x
            _spec((Din, th), lambda i, h: (0, h), invariant=(nh == 1)),     # w1^T
            _spec((1, th), lambda i, h: (0, h), invariant=(nh == 1)),       # b1
            _spec((th, Dout_p), lambda i, h: (h, 0), invariant=(nh == 1)),  # w2^T
            _spec((1, Dout_p), lambda i, h: (0, 0), invariant=True),        # b2
        ],
        out_specs=pl.BlockSpec((tb, Dout_p), lambda i, h: (i, 0)),
        scratch_shapes=[pltpu.VMEM((tb, Dout_p), jnp.float32)],  # fc2 accumulator
        compiler_params=pltpu.CompilerParams(
            dimension_semantics=("parallel", "arbitrary"),
            vmem_limit_bytes=vmem_limit),
    )(x_p, w1t, b1r, w2t, b2r)

    return out[:B, :Dout]


def reference_forward(x, w1, b1, w2, b2):
    h = jnp.maximum(x @ w1.T + b1, 0.0)
    return jax.nn.sigmoid(h @ w2.T + b2)


if __name__ == "__main__":
    # Small shapes consistent with the module: batch=8, input_dim=16,
    # hidden_dim=32, output_dim=4 (PyTorch (out, in) parameter layout).
    B, input_dim, hidden_dim, output_dim = 8, 16, 32, 4

    key = jax.random.PRNGKey(0)
    kx, kw1, kb1, kw2, kb2 = jax.random.split(key, 5)
    x = jax.random.normal(kx, (B, input_dim), dtype=jnp.float32)
    w1 = jax.random.normal(kw1, (hidden_dim, input_dim), dtype=jnp.float32) * 0.1
    b1 = jax.random.normal(kb1, (hidden_dim,), dtype=jnp.float32) * 0.1
    w2 = jax.random.normal(kw2, (output_dim, hidden_dim), dtype=jnp.float32) * 0.1
    b2 = jax.random.normal(kb2, (output_dim,), dtype=jnp.float32) * 0.1

    ref = reference_forward(x, w1, b1, w2, b2)

    # f32 MXU path: tight numerical check against the reference.
    params32, meta32 = prepare_mlp_params(w1, b1, w2, b2, compute_dtype=jnp.float32)
    out32 = jax.block_until_ready(mlp_forward(x, params32, meta32))
    assert out32.shape == (B, output_dim)
    assert jnp.allclose(out32, ref, atol=1e-5, rtol=1e-5), "f32 mismatch vs reference"

    # Default bf16 MXU path (recommended on v6e/v7x): looser tolerance.
    params_bf, meta_bf = prepare_mlp_params(w1, b1, w2, b2)  # bf16 default
    out_bf = jax.block_until_ready(mlp_forward(x, params_bf, meta_bf))
    assert out_bf.shape == (B, output_dim)
    assert jnp.allclose(out_bf, ref, atol=3e-2, rtol=3e-2), "bf16 mismatch vs reference"

    print("KERNEL_OK")
</pallas_src>

<mosaic_0001>
module attributes {stable_mosaic.version = 11 : i64} {
  func.func @mlp_kernel(%arg0: i32, %arg1: i32, %arg2: memref<8x16xf32, #tpu.memory_space<vmem>>, %arg3: memref<16x32xf32, #tpu.memory_space<vmem>>, %arg4: memref<1x32xf32, #tpu.memory_space<vmem>>, %arg5: memref<32x128xf32, #tpu.memory_space<vmem>>, %arg6: memref<1x128xf32, #tpu.memory_space<vmem>>, %arg7: memref<8x128xf32, #tpu.memory_space<vmem>>, %arg8: memref<8x128xf32, #tpu.memory_space<vmem>>) attributes {dimension_semantics = [#tpu.dimension_semantics<parallel>, #tpu.dimension_semantics<arbitrary>], iteration_bounds = array<i64: 1, 1>, scalar_prefetch = 0 : i64, scratch_operands = 1 : i64, tpu.core_type = #tpu.core_type<tc>, window_params = [{pipeline_mode = #tpu.pipeline_mode<synchronous>, transform_indices = @transform_0, window_bounds = array<i64: 8, 16>}, {pipeline_mode = #tpu.pipeline_mode<synchronous>, transform_indices = @transform_1, window_bounds = array<i64: 16, 32>}, {pipeline_mode = #tpu.pipeline_mode<synchronous>, transform_indices = @transform_2, window_bounds = array<i64: 1, 32>}, {pipeline_mode = #tpu.pipeline_mode<synchronous>, transform_indices = @transform_3, window_bounds = array<i64: 32, 128>}, {pipeline_mode = #tpu.pipeline_mode<synchronous>, transform_indices = @transform_4, window_bounds = array<i64: 1, 128>}, {transform_indices = @transform_5, window_bounds = array<i64: 8, 128>}]} {
    %c0_i32 = arith.constant 0 : i32
    %0 = arith.cmpi eq, %arg1, %c0_i32 : i32
    %1 = arith.extui %0 : i1 to i32
    %c0_i32_0 = arith.constant 0 : i32
    %2 = arith.cmpi ne, %1, %c0_i32_0 : i32
    scf.if %2 {
      %cst_16 = arith.constant 0.000000e+00 : f32
      %19 = vector.broadcast %cst_16 : f32 to vector<8x128xf32>
      %c0_17 = arith.constant 0 : index
      %c0_18 = arith.constant 0 : index
      %20 = vector.load %arg8[%c0_17, %c0_18] : memref<8x128xf32, #tpu.memory_space<vmem>>, vector<8x128xf32>
      tpu.vector_store %arg8[%c0_17, %c0_18], %19 {strides = array<i32>} : memref<8x128xf32, #tpu.memory_space<vmem>>, vector<8x128xf32>,
    } else {
    }
    %c0 = arith.constant 0 : index
    %c0_1 = arith.constant 0 : index
    %3 = vector.load %arg2[%c0, %c0_1] : memref<8x16xf32, #tpu.memory_space<vmem>>, vector<8x16xf32>
    %c0_2 = arith.constant 0 : index
    %c0_3 = arith.constant 0 : index
    %4 = vector.load %arg3[%c0_2, %c0_3] : memref<16x32xf32, #tpu.memory_space<vmem>>, vector<16x32xf32>
    %cst = arith.constant dense<0.000000e+00> : vector<8x32xf32>
    %5 = tpu.matmul %3, %4, %cst {dimension_numbers = #tpu.dot_dimension_numbers<[1], [0], [0], [1], [0, 0, 1, 1], [], []>} : vector<8x16xf32>, vector<16x32xf32>, vector<8x32xf32> -> vector<8x32xf32>
    %c0_4 = arith.constant 0 : index
    %c0_5 = arith.constant 0 : index
    %6 = vector.load %arg4[%c0_4, %c0_5] : memref<1x32xf32, #tpu.memory_space<vmem>>, vector<1x32xf32>
    %7 = vector.broadcast %6 : vector<1x32xf32> to vector<8x32xf32>
    %8 = arith.addf %5, %7 : vector<8x32xf32>
    %cst_6 = arith.constant 0.000000e+00 : f32
    %9 = vector.broadcast %cst_6 : f32 to vector<8x32xf32>
    %10 = arith.maximumf %8, %9 : vector<8x32xf32>
    %c0_7 = arith.constant 0 : index
    %c0_8 = arith.constant 0 : index
    %11 = vector.load %arg8[%c0_7, %c0_8] : memref<8x128xf32, #tpu.memory_space<vmem>>, vector<8x128xf32>
    %c0_9 = arith.constant 0 : index
    %c0_10 = arith.constant 0 : index
    %12 = vector.load %arg5[%c0_9, %c0_10] : memref<32x128xf32, #tpu.memory_space<vmem>>, vector<32x128xf32>
    %cst_11 = arith.constant dense<0.000000e+00> : vector<8x128xf32>
    %13 = tpu.matmul %10, %12, %cst_11 {dimension_numbers = #tpu.dot_dimension_numbers<[1], [0], [0], [1], [0, 0, 1, 1], [], []>} : vector<8x32xf32>, vector<32x128xf32>, vector<8x128xf32> -> vector<8x128xf32>
    %14 = arith.addf %11, %13 : vector<8x128xf32>
    %c0_12 = arith.constant 0 : index
    %c0_13 = arith.constant 0 : index
    %15 = vector.load %arg8[%c0_12, %c0_13] : memref<8x128xf32, #tpu.memory_space<vmem>>, vector<8x128xf32>
    tpu.vector_store %arg8[%c0_12, %c0_13], %14 {strides = array<i32>} : memref<8x128xf32, #tpu.memory_space<vmem>>, vector<8x128xf32>,
    %c0_i32_14 = arith.constant 0 : i32
    %16 = arith.cmpi eq, %arg1, %c0_i32_14 : i32
    %17 = arith.extui %16 : i1 to i32
    %c0_i32_15 = arith.constant 0 : i32
    %18 = arith.cmpi ne, %17, %c0_i32_15 : i32
    scf.if %18 {
      %c0_16 = arith.constant 0 : index
      %c0_17 = arith.constant 0 : index
      %19 = vector.load %arg8[%c0_16, %c0_17] : memref<8x128xf32, #tpu.memory_space<vmem>>, vector<8x128xf32>
      %c0_18 = arith.constant 0 : index
      %c0_19 = arith.constant 0 : index
      %20 = vector.load %arg6[%c0_18, %c0_19] : memref<1x128xf32, #tpu.memory_space<vmem>>, vector<1x128xf32>
      %21 = vector.broadcast %20 : vector<1x128xf32> to vector<8x128xf32>
      %22 = arith.addf %19, %21 : vector<8x128xf32>
      %cst_20 = arith.constant 5.000000e-01 : f32
      %23 = vector.broadcast %cst_20 : f32 to vector<8x128xf32>
      %24 = arith.mulf %23, %22 : vector<8x128xf32>
      %25 = math.tanh %24 : vector<8x128xf32>
      %cst_21 = arith.constant 5.000000e-01 : f32
      %26 = vector.broadcast %cst_21 : f32 to vector<8x128xf32>
      %27 = arith.mulf %26, %25 : vector<8x128xf32>
      %cst_22 = arith.constant 5.000000e-01 : f32
      %28 = vector.broadcast %cst_22 : f32 to vector<8x128xf32>
      %29 = arith.addf %27, %28 : vector<8x128xf32>
      %c0_23 = arith.constant 0 : index
      %c0_24 = arith.constant 0 : index
      %30 = vector.load %arg7[%c0_23, %c0_24] : memref<8x128xf32, #tpu.memory_space<vmem>>, vector<8x128xf32>
      tpu.vector_store %arg7[%c0_23, %c0_24], %29 {strides = array<i32>} : memref<8x128xf32, #tpu.memory_space<vmem>>, vector<8x128xf32>,
    } else {
    }
    return
  }
  func.func @transform_0(%arg0: i32, %arg1: i32) -> (i32, i32) {
    %c0_i32 = arith.constant 0 : i32
    %c0_i32_0 = arith.constant 0 : i32
    return %arg0, %c0_i32 : i32, i32
  }
  func.func @transform_1(%arg0: i32, %arg1: i32) -> (i32, i32) {
    %c0_i32 = arith.constant 0 : i32
    %c0_i32_0 = arith.constant 0 : i32
    return %c0_i32, %arg1 : i32, i32
  }
  func.func @transform_2(%arg0: i32, %arg1: i32) -> (i32, i32) {
    %c0_i32 = arith.constant 0 : i32
    %c0_i32_0 = arith.constant 0 : i32
    return %c0_i32, %arg1 : i32, i32
  }
  func.func @transform_3(%arg0: i32, %arg1: i32) -> (i32, i32) {
    %c0_i32 = arith.constant 0 : i32
    %c0_i32_0 = arith.constant 0 : i32
    return %arg1, %c0_i32 : i32, i32
  }
  func.func @transform_4(%arg0: i32, %arg1: i32) -> (i32, i32) {
    %c0_i32 = arith.constant 0 : i32
    %c0_i32_0 = arith.constant 0 : i32
    %c0_i32_1 = arith.constant 0 : i32
    return %c0_i32, %c0_i32_0 : i32, i32
  }
  func.func @transform_5(%arg0: i32, %arg1: i32) -> (i32, i32) {
    %c0_i32 = arith.constant 0 : i32
    %c0_i32_0 = arith.constant 0 : i32
    return %arg0, %c0_i32 : i32, i32
  }
}

</mosaic_0001>

<llo_original>
// kernel: tpu_custom_call.1
$region0: #{tpu_custom_call.1}
  #allocation0 [shape = 'u32[]', space=smem, size = 0x4, offset = 0x4, fixed_abs, tag = 'smem constant byte address 0x4 - core index']
  #allocation1 [shape = 'u32[72,128]{1,0:T(1,128)}', space=vmem, size = 0x9000, scoped, tag = 'internal scratch']
  #allocation2 [shape = 'f32[8,128]{1,0:T(8,128)}', space=vmem, size = 0x1000, scoped, tag = 'scratch operand']
  %s0 = inlined_call_operand.hbm [shape: f32[8,16], index: 0, kind: input, shape index: {}]
  %s1 = inlined_call_operand.hbm [shape: f32[16,32], index: 1, kind: input, shape index: {}]
  %s2 = inlined_call_operand.vmem [shape: f32[1,32], index: 2, kind: input, shape index: {}]
  %s3 = inlined_call_operand.hbm [shape: f32[32,128], index: 3, kind: input, shape index: {}]
  %s4 = inlined_call_operand.vmem [shape: f32[1,128], index: 4, kind: input, shape index: {}]
  %s5 = inlined_call_operand.hbm [shape: f32[8,128], index: 5, kind: output, shape index: {}]
  %s6 = sld [smem:[#allocation0]]
  $region50: #{tpu_custom_call.1} parent=0
    _
  %s8 = ssub.s32 1, %s6
  %s9 = scalar_select 0, %s8, %s6
  $region1: #{tpu_custom_call.1} parent=0
    #allocation3 [shape = 'u8[4096]{0}', space=vmem, size = 0x1000, scoped, tag = 'input window, operand 0, single buffered']
    #allocation4 [shape = 's32[1]{0}', space=sflag, size = 0x4, scoped, tag = 'scoped memory for tpu_custom_call.1']
    #allocation5 [shape = 's32[1]{0}', space=sflag, size = 0x4, scoped, tag = 'scoped memory for tpu_custom_call.1']
    #allocation6 [shape = 'u8[8192]{0}', space=vmem, size = 0x2000, scoped, tag = 'input window, operand 1, single buffered']
    #allocation7 [shape = 's32[1]{0}', space=sflag, size = 0x4, scoped, tag = 'scoped memory for tpu_custom_call.1']
    #allocation8 [shape = 'u8[16384]{0}', space=vmem, size = 0x4000, scoped, tag = 'input window, operand 3, single buffered']
    #allocation9 [shape = 'u8[4096]{0}', space=vmem, size = 0x1000, scoped, tag = 'output window, operand 0, single buffered']
    %10 = vsyncpa [#allocation4], 0
    %11 = vsyncpa [#allocation7], 0
    %12 = vsyncpa [#allocation5], 0
    // Predicated region
    $region2: #{tpu_custom_call.1} parent=1 // pred_check
      _
    $region3: #{tpu_custom_call.1} parent=1 // pred_check_branch
      %14 = sbr.rel (0) target = $region5
    $region4: #{tpu_custom_call.1} parent=1 // pred_region
      %16 = vsyncadd [#allocation4], 0
      %s18 = sshll.u32 %s0, 4
      %s19 = int_to_ptr.hbm [resolvable:$true] %s18
      %s20 = sshll.u32 [#allocation3], 4
      %s21 = int_to_ptr.vmem [resolvable:$true] %s20
      %23 = dma.hbm_to_vmem [thread:$0]  %s19, 128, %s21, [#allocation4]
    $region5: #{tpu_custom_call.1} parent=1 // pred_fallthru
      _
    // Predicated region
    $region6: #{tpu_custom_call.1} parent=1 // pred_check
      _
    $region7: #{tpu_custom_call.1} parent=1 // pred_check_branch
      %25 = sbr.rel (0) target = $region9
    $region8: #{tpu_custom_call.1} parent=1 // pred_region
      %27 = vsyncadd [#allocation7], 0
      %s28 = sshll.u32 %s1, 4
      %s29 = int_to_ptr.hbm [resolvable:$true] %s28
      %s30 = sshll.u32 [#allocation6], 4
      %s31 = int_to_ptr.vmem [resolvable:$true] %s30
      %36 = dma.hbm_to_vmem [thread:$0]  %s29, 256, %s31, [#allocation7], 128, 128, 8
    $region9: #{tpu_custom_call.1} parent=1 // pred_fallthru
      _
    // Predicated region
    $region10: #{tpu_custom_call.1} parent=1 // pred_check
      _
    $region11: #{tpu_custom_call.1} parent=1 // pred_check_branch
      %38 = sbr.rel (0) target = $region13
    $region12: #{tpu_custom_call.1} parent=1 // pred_region
      _
    $region13: #{tpu_custom_call.1} parent=1 // pred_fallthru
      _
    // Predicated region
    $region14: #{tpu_custom_call.1} parent=1 // pred_check
      _
    $region15: #{tpu_custom_call.1} parent=1 // pred_check_branch
      %40 = sbr.rel (0) target = $region17
    $region16: #{tpu_custom_call.1} parent=1 // pred_region
      %42 = vsyncadd [#allocation7], 0
      %s43 = sshll.u32 %s3, 4
      %s44 = int_to_ptr.hbm [resolvable:$true] %s43
      %s45 = sshll.u32 [#allocation8], 4
      %s46 = int_to_ptr.vmem [resolvable:$true] %s45
      %51 = dma.hbm_to_vmem [thread:$0]  %s44, 512, %s46, [#allocation7], 128, 128, 8
    $region17: #{tpu_custom_call.1} parent=1 // pred_fallthru
      _
    // Predicated region
    $region18: #{tpu_custom_call.1} parent=1 // pred_check
      _
    $region19: #{tpu_custom_call.1} parent=1 // pred_check_branch
      %53 = sbr.rel (0) target = $region21
    $region20: #{tpu_custom_call.1} parent=1 // pred_region
      _
    $region21: #{tpu_custom_call.1} parent=1 // pred_fallthru
      _
    // Predicated region
    $region22: #{tpu_custom_call.1} parent=1 // pred_check
      _
    $region23: #{tpu_custom_call.1} parent=1 // pred_check_branch
      %55 = sbr.rel (0) target = $region25
    $region24: #{tpu_custom_call.1} parent=1 // pred_region
      %57 = dma.done [#allocation4], 128
    $region25: #{tpu_custom_call.1} parent=1 // pred_fallthru
      _
    // Predicated region
    $region26: #{tpu_custom_call.1} parent=1 // pred_check
      _
    $region27: #{tpu_custom_call.1} parent=1 // pred_check_branch
      %59 = sbr.rel (0) target = $region29
    $region28: #{tpu_custom_call.1} parent=1 // pred_region
      %61 = dma.done [#allocation7], 256
    $region29: #{tpu_custom_call.1} parent=1 // pred_fallthru
      _
    // Predicated region
    $region30: #{tpu_custom_call.1} parent=1 // pred_check
      _
    $region31: #{tpu_custom_call.1} parent=1 // pred_check_branch
      %63 = sbr.rel (0) target = $region33
    $region32: #{tpu_custom_call.1} parent=1 // pred_region
      %65 = dma.done [#allocation7], 512
    $region33: #{tpu_custom_call.1} parent=1 // pred_fallthru
      _
    %p66 = scmp.eq.s32.totalorder 0, 0
    // Predicated region
    $region34: #{tpu_custom_call.1} parent=1 // pred_check
      %p67 = pneg %p66
    $region35: #{tpu_custom_call.1} parent=1 // pred_check_branch
      %69 = sbr.rel (%p67) target = $region37
    $region36: #{tpu_custom_call.1} parent=1 // pred_region
      %70 = vst [vmem:[#allocation2] sm:$0xff] 0.0
    $region37: #{tpu_custom_call.1} parent=1 // pred_fallthru
      _
    %v71 = vld [vmem:[#allocation3] sm:$0xff]
    %v72 = vld [vmem:[#allocation6] sm:$0xff]
    %v73 = vld [vmem:[#allocation6 + $0x8] sm:$0xff]
    %v74 = vld [vmem:[%s2] sm:$0x1]
    %v76 = vperm.slane %v74, 0
    %vm78 = vcmask 130048
    %v80 = vsel %vm78, %v71, 0
    %82 = vmatpush.msra.mxu0 0.0
    %83 = vmatpush.msra.mxu0 0.0
    %84 = vmatpush.msra.mxu0 0.0
    %85 = vmatpush.msra.mxu0 0.0
    %86 = vmatpush.msra.mxu0 0.0
    %87 = vmatpush.msra.mxu0 0.0
    %88 = vmatpush.msra.mxu0 0.0
    %89 = vmatpush.msra.mxu0 0.0
    %90 = vmatpush.msra.mxu0 0.0
    %91 = vmatpush.msra.mxu0 0.0
    %92 = vmatpush.msra.mxu0 0.0
    %93 = vmatpush.msra.mxu0 0.0
    %94 = vmatpush.msra.mxu0 0.0
    %95 = vmatpush.msra.mxu0 0.0
    %96 = vmatpush.msra.mxu0 %v73
    %97 = vmatpush.msra.mxu0 %v72
    %98 = vmatmul.f32.gmra.mxu0 %v80
    %v99 = vpop.f32.mrf.mxu0
    %v100 = vadd.f32 %v76, %v99
    %101 = vdwg.mxu0
    %v102 = vmax.f32 %v100, 0.0
    %v103 = vld [vmem:[#allocation2] sm:$0xff]
    %v104 = vld [vmem:[#allocation8] sm:$0xff]
    %v105 = vld [vmem:[#allocation8 + $0x8] sm:$0xff]
    %v106 = vld [vmem:[#allocation8 + $0x10] sm:$0xff]
    %v107 = vld [vmem:[#allocation8 + $0x18] sm:$0xff]
    %vm108 = vcmask 261120
    %v110 = vsel %vm108, %v102, 0
    %112 = vmatpush.msra.mxu0 0.0
    %113 = vmatpush.msra.mxu0 0.0
    %114 = vmatpush.msra.mxu0 0.0
    %115 = vmatpush.msra.mxu0 0.0
    %116 = vmatpush.msra.mxu0 0.0
    %117 = vmatpush.msra.mxu0 0.0
    %118 = vmatpush.msra.mxu0 0.0
    %119 = vmatpush.msra.mxu0 0.0
    %120 = vmatpush.msra.mxu0 0.0
    %121 = vmatpush.msra.mxu0 0.0
    %122 = vmatpush.msra.mxu0 0.0
    %123 = vmatpush.msra.mxu0 0.0
    %124 = vmatpush.msra.mxu0 %v107
    %125 = vmatpush.msra.mxu0 %v106
    %126 = vmatpush.msra.mxu0 %v105
    %127 = vmatpush.msra.mxu0 %v104
    %128 = vmatmul.f32.gmra.mxu0 %v110
    %v129 = vpop.f32.mrf.mxu0
    %v130 = vadd.f32 0.0, %v129
    %131 = vdwg.mxu0
    %v132 = vadd.f32 %v103, %v130
    %133 = vst [vmem:[#allocation2] sm:$0xff] %v132
    // Predicated region
    $region38: #{tpu_custom_call.1} parent=1 // pred_check
      %p134 = pneg %p66
    $region39: #{tpu_custom_call.1} parent=1 // pred_check_branch
      %136 = sbr.rel (%p134) target = $region41
    $region40: #{tpu_custom_call.1} parent=1 // pred_region
      %v137 = vld [vmem:[#allocation2] sm:$0xff]
      %v138 = vld [vmem:[%s4] sm:$0x1]
      %v140 = vperm.slane %v138, 0
      %v142 = vadd.f32 %v137, %v140
      %v143 = vmul.f32 %v142, 0.5
      %v144 = vtanh.pop %v143
      %v145 = vmul.f32 %v144, 0.5
      %v146 = vadd.f32 %v145, 0.5
      %147 = vst [vmem:[#allocation9] sm:$0xff] %v146
    $region41: #{tpu_custom_call.1} parent=1 // pred_fallthru
      _
    // Predicated region
    $region42: #{tpu_custom_call.1} parent=1 // pred_check
      _
    $region43: #{tpu_custom_call.1} parent=1 // pred_check_branch
      %149 = sbr.rel (0) target = $region45
    $region44: #{tpu_custom_call.1} parent=1 // pred_region
      %151 = vsyncadd [#allocation5], 0
      %s153 = sshll.u32 [#allocation9], 4
      %s154 = int_to_ptr.vmem [resolvable:$true] %s153
      %s155 = sshll.u32 %s5, 4
      %s156 = int_to_ptr.hbm [resolvable:$true] %s155
      %158 = dma.vmem_to_hbm [thread:$0]  %s154, 128, %s156, [#allocation5]
    $region45: #{tpu_custom_call.1} parent=1 // pred_fallthru
      _
    // Predicated region
    $region46: #{tpu_custom_call.1} parent=1 // pred_check
      _
    $region47: #{tpu_custom_call.1} parent=1 // pred_check_branch
      %160 = sbr.rel (0) target = $region49
    $region48: #{tpu_custom_call.1} parent=1 // pred_region
      %162 = dma.done [#allocation5], 128
    $region49: #{tpu_custom_call.1} parent=1 // pred_fallthru
      _
    %163 = vsyncpa [#allocation4], 1
    %164 = vsyncpa [#allocation7], 1
    %165 = vsyncpa [#allocation5], 1

</llo_original>
